<compile_context>
chip_gen: v7x
topology: tpu7x:2x2x1
jax: 0.10.0
libtpu: 0.0.40
codegen_flags: <defaults>
</compile_context>

<pallas_src>
import jax
import jax.numpy as jnp
from jax.experimental import pallas as pl
from jax.experimental.pallas import tpu as pltpu

BN_EPS = 1e-5

# --- packed-parameter slab layout (rows x 128 lanes, f32) -------------------
W1_OFF = 0      # rows 0..9    : W1 (10 x 20), lanes 0..19 real
W2_OFF = 16     # rows 16..143 : W2 block (128 x 128), [0:20, 0:10] real
W3_OFF = 144    # rows 144..271: W3 block (128 x 128), [0:10, 0:3]  real
VEC_OFF = 272   # +0 g1, +1 beta1, +2 g2, +3 beta2, +4 b3 (lane-padded rows)
N_ROWS = 280    # padded to a multiple of 8 sublanes


def _bn_fused(h, gamma, beta, inv_b):
    """Training-mode BatchNorm1d, one-pass stats + folded affine.

    var = E[h^2] - E[h]^2 (biased);  y = h*scale + shift with
    scale = gamma * rsqrt(var+eps), shift = beta - mean*scale.
    Zero-padded lanes (gamma = beta = h = 0) stay exactly zero.
    """
    s1 = jnp.sum(h, axis=0, keepdims=True)            # (1, 128)
    s2 = jnp.sum(h * h, axis=0, keepdims=True)        # (1, 128)
    mean = s1 * inv_b
    var = jnp.maximum(s2 * inv_b - mean * mean, 0.0)
    scale = gamma * jax.lax.rsqrt(var + BN_EPS)        # (1, 128) — EUP rsqrt
    shift = beta - mean * scale
    return h * scale + shift                           # single mul+add on tile


def _mlp_kernel(x_ref, p_ref, o_ref):
    x = x_ref[...]                                     # (B, 10)
    inv_b = 1.0 / x.shape[0]

    # static, aligned views into the packed parameter slab
    w1 = p_ref[W1_OFF:W1_OFF + 10, :]                  # (10, 128)
    w2 = p_ref[W2_OFF:W2_OFF + 128, :]                 # (128, 128)
    w3 = p_ref[W3_OFF:W3_OFF + 128, :]                 # (128, 128)
    g1 = p_ref[VEC_OFF + 0:VEC_OFF + 1, :]             # (1, 128)
    be1 = p_ref[VEC_OFF + 1:VEC_OFF + 2, :]
    g2 = p_ref[VEC_OFF + 2:VEC_OFF + 3, :]
    be2 = p_ref[VEC_OFF + 3:VEC_OFF + 4, :]
    b3 = p_ref[VEC_OFF + 4:VEC_OFF + 5, :]

    # layer1 + bn1 (b1 cancels exactly under training-mode BN)
    h = jnp.dot(x, w1, preferred_element_type=jnp.float32)   # (B, 128)
    h = _bn_fused(h, g1, be1, inv_b)

    # layer2 + bn2 (b2 cancels exactly under training-mode BN)
    h = jnp.dot(h, w2, preferred_element_type=jnp.float32)   # (B, 128)
    h = _bn_fused(h, g2, be2, inv_b)

    # layer3 (lane-dense 128-wide output; lanes 3..127 are exact zeros)
    out = jnp.dot(h, w3, preferred_element_type=jnp.float32) + b3
    o_ref[...] = out.astype(o_ref.dtype)


def pack_params(params):
    """Build the single lane-padded parameter slab.  Do this ONCE per set of
    weights and reuse the slab across calls (weight DMA is the remaining fixed
    cost per invocation)."""
    (w1, b1, g1, be1, w2, b2, g2, be2, w3, b3) = params
    del b1, b2  # dropped: exact no-ops before training-mode BatchNorm
    P = jnp.zeros((N_ROWS, 128), jnp.float32)
    P = P.at[W1_OFF:W1_OFF + 10, 0:20].set(w1)
    P = P.at[W2_OFF:W2_OFF + 20, 0:10].set(w2)
    P = P.at[W3_OFF:W3_OFF + 10, 0:3].set(w3)
    P = P.at[VEC_OFF + 0, 0:20].set(g1.reshape(-1))
    P = P.at[VEC_OFF + 1, 0:20].set(be1.reshape(-1))
    P = P.at[VEC_OFF + 2, 0:10].set(g2.reshape(-1))
    P = P.at[VEC_OFF + 3, 0:10].set(be2.reshape(-1))
    P = P.at[VEC_OFF + 4, 0:3].set(b3.reshape(-1))
    return P


@jax.jit
def neural_network_layer_cup(x, packed_params):
    B = x.shape[0]
    vmem = pl.BlockSpec(memory_space=pltpu.MemorySpace.VMEM)
    flops = 2 * B * (10 * 20 + 20 * 10 + 10 * 3) + 12 * B * (20 + 10)
    bytes_accessed = 4 * (x.size + packed_params.size + B * 128)
    out = pl.pallas_call(
        _mlp_kernel,
        out_shape=jax.ShapeDtypeStruct((B, 128), jnp.float32),
        in_specs=[vmem, vmem],
        out_specs=vmem,
        cost_estimate=pl.CostEstimate(
            flops=flops, transcendentals=2 * 128,
            bytes_accessed=bytes_accessed),
    )(x, packed_params)
    return out[:, :3]            # drop lane padding


def init_params(key):
    """Deterministic init mirroring the PyTorch module's shapes.
    Linear weights stored as (in_features, out_features) so kernel does x @ W.
    """
    ks = jax.random.split(key, 3)

    def lin(k, fan_in, fan_out):
        bound = 1.0 / jnp.sqrt(fan_in)
        kw, kb = jax.random.split(k)
        w = jax.random.uniform(kw, (fan_in, fan_out), jnp.float32, -bound, bound)
        b = jax.random.uniform(kb, (1, fan_out), jnp.float32, -bound, bound)
        return w, b

    w1, b1 = lin(ks[0], 10, 20)
    w2, b2 = lin(ks[1], 20, 10)
    w3, b3 = lin(ks[2], 10, 3)
    # BatchNorm1d default init: gamma = 1, beta = 0.
    g1, be1 = jnp.ones((1, 20), jnp.float32), jnp.zeros((1, 20), jnp.float32)
    g2, be2 = jnp.ones((1, 10), jnp.float32), jnp.zeros((1, 10), jnp.float32)
    return (w1, b1, g1, be1, w2, b2, g2, be2, w3, b3)


def reference(x, params):
    """Pure-JAX reference mirroring the PyTorch forward literally
    (including the biases and two-pass batch statistics)."""
    (w1, b1, g1, be1, w2, b2, g2, be2, w3, b3) = params

    def bn(h, gamma, beta):
        mean = jnp.mean(h, axis=0, keepdims=True)
        var = jnp.mean((h - mean) ** 2, axis=0, keepdims=True)
        return (h - mean) / jnp.sqrt(var + BN_EPS) * gamma + beta

    h = x @ w1 + b1
    h = bn(h, g1, be1)
    h = h @ w2 + b2
    h = bn(h, g2, be2)
    return h @ w3 + b3


if __name__ == "__main__":
    key = jax.random.PRNGKey(0)
    kx, kp = jax.random.split(key)

    B = 8                                   # batch > 1 so BatchNorm is meaningful
    x = jax.random.normal(kx, (B, 10), dtype=jnp.float32)
    params = init_params(kp)
    packed = pack_params(params)            # build once, reuse across calls

    out = neural_network_layer_cup(x, packed)
    out = jax.block_until_ready(out)

    ref = reference(x, params)
    assert out.shape == (B, 3), out.shape
    max_diff = jnp.max(jnp.abs(out - ref))
    assert jnp.allclose(out, ref, atol=1e-4, rtol=1e-4), (
        f"max abs diff {max_diff}")

    print("KERNEL_OK")
</pallas_src>

<mosaic_0001>
module attributes {stable_mosaic.version = 11 : i64} {
  func.func @_mlp_kernel(%arg0: memref<8x10xf32, #tpu.memory_space<vmem>>, %arg1: memref<280x128xf32, #tpu.memory_space<vmem>>, %arg2: memref<8x128xf32, #tpu.memory_space<vmem>>) attributes {dimension_semantics = [], scalar_prefetch = 0 : i64, scratch_operands = 0 : i64, tpu.core_type = #tpu.core_type<tc>} {
    %c0 = arith.constant 0 : index
    %c0_0 = arith.constant 0 : index
    %0 = vector.load %arg0[%c0, %c0_0] : memref<8x10xf32, #tpu.memory_space<vmem>>, vector<8x10xf32>
    %c0_1 = arith.constant 0 : index
    %c0_2 = arith.constant 0 : index
    %1 = vector.load %arg1[%c0_1, %c0_2] : memref<280x128xf32, #tpu.memory_space<vmem>>, vector<10x128xf32>
    %c16 = arith.constant 16 : index
    %c0_3 = arith.constant 0 : index
    %2 = vector.load %arg1[%c16, %c0_3] : memref<280x128xf32, #tpu.memory_space<vmem>>, vector<128x128xf32>
    %c144 = arith.constant 144 : index
    %c0_4 = arith.constant 0 : index
    %3 = vector.load %arg1[%c144, %c0_4] : memref<280x128xf32, #tpu.memory_space<vmem>>, vector<128x128xf32>
    %c272 = arith.constant 272 : index
    %c0_5 = arith.constant 0 : index
    %4 = vector.load %arg1[%c272, %c0_5] : memref<280x128xf32, #tpu.memory_space<vmem>>, vector<1x128xf32>
    %c273 = arith.constant 273 : index
    %c0_6 = arith.constant 0 : index
    %5 = vector.load %arg1[%c273, %c0_6] : memref<280x128xf32, #tpu.memory_space<vmem>>, vector<1x128xf32>
    %c274 = arith.constant 274 : index
    %c0_7 = arith.constant 0 : index
    %6 = vector.load %arg1[%c274, %c0_7] : memref<280x128xf32, #tpu.memory_space<vmem>>, vector<1x128xf32>
    %c275 = arith.constant 275 : index
    %c0_8 = arith.constant 0 : index
    %7 = vector.load %arg1[%c275, %c0_8] : memref<280x128xf32, #tpu.memory_space<vmem>>, vector<1x128xf32>
    %c276 = arith.constant 276 : index
    %c0_9 = arith.constant 0 : index
    %8 = vector.load %arg1[%c276, %c0_9] : memref<280x128xf32, #tpu.memory_space<vmem>>, vector<1x128xf32>
    %cst = arith.constant dense<0.000000e+00> : vector<8x128xf32>
    %9 = tpu.matmul %0, %1, %cst {dimension_numbers = #tpu.dot_dimension_numbers<[1], [0], [0], [1], [0, 0, 1, 1], [], []>} : vector<8x10xf32>, vector<10x128xf32>, vector<8x128xf32> -> vector<8x128xf32>
    %cst_10 = arith.constant dense<0.000000e+00> : vector<128xf32>
    %10 = vector.multi_reduction <add>, %9, %cst_10 [0] : vector<8x128xf32> to vector<128xf32>
    %11 = vector.shape_cast %10 : vector<128xf32> to vector<1x128xf32>
    %12 = arith.mulf %9, %9 : vector<8x128xf32>
    %cst_11 = arith.constant dense<0.000000e+00> : vector<128xf32>
    %13 = vector.multi_reduction <add>, %12, %cst_11 [0] : vector<8x128xf32> to vector<128xf32>
    %14 = vector.shape_cast %13 : vector<128xf32> to vector<1x128xf32>
    %cst_12 = arith.constant 1.250000e-01 : f32
    %15 = vector.broadcast %cst_12 : f32 to vector<1x128xf32>
    %16 = arith.mulf %11, %15 : vector<1x128xf32>
    %cst_13 = arith.constant 1.250000e-01 : f32
    %17 = vector.broadcast %cst_13 : f32 to vector<1x128xf32>
    %18 = arith.mulf %14, %17 : vector<1x128xf32>
    %19 = arith.mulf %16, %16 : vector<1x128xf32>
    %20 = arith.subf %18, %19 : vector<1x128xf32>
    %cst_14 = arith.constant 0.000000e+00 : f32
    %21 = vector.broadcast %cst_14 : f32 to vector<1x128xf32>
    %22 = arith.maximumf %20, %21 : vector<1x128xf32>
    %cst_15 = arith.constant 9.99999974E-6 : f32
    %23 = vector.broadcast %cst_15 : f32 to vector<1x128xf32>
    %24 = arith.addf %22, %23 : vector<1x128xf32>
    %25 = math.rsqrt %24 : vector<1x128xf32>
    %26 = arith.mulf %4, %25 : vector<1x128xf32>
    %27 = arith.mulf %16, %26 : vector<1x128xf32>
    %28 = arith.subf %5, %27 : vector<1x128xf32>
    %29 = vector.broadcast %26 : vector<1x128xf32> to vector<8x128xf32>
    %30 = arith.mulf %9, %29 : vector<8x128xf32>
    %31 = vector.broadcast %28 : vector<1x128xf32> to vector<8x128xf32>
    %32 = arith.addf %30, %31 : vector<8x128xf32>
    %cst_16 = arith.constant dense<0.000000e+00> : vector<8x128xf32>
    %33 = tpu.matmul %32, %2, %cst_16 {dimension_numbers = #tpu.dot_dimension_numbers<[1], [0], [0], [1], [0, 0, 1, 1], [], []>} : vector<8x128xf32>, vector<128x128xf32>, vector<8x128xf32> -> vector<8x128xf32>
    %cst_17 = arith.constant dense<0.000000e+00> : vector<128xf32>
    %34 = vector.multi_reduction <add>, %33, %cst_17 [0] : vector<8x128xf32> to vector<128xf32>
    %35 = vector.shape_cast %34 : vector<128xf32> to vector<1x128xf32>
    %36 = arith.mulf %33, %33 : vector<8x128xf32>
    %cst_18 = arith.constant dense<0.000000e+00> : vector<128xf32>
    %37 = vector.multi_reduction <add>, %36, %cst_18 [0] : vector<8x128xf32> to vector<128xf32>
    %38 = vector.shape_cast %37 : vector<128xf32> to vector<1x128xf32>
    %cst_19 = arith.constant 1.250000e-01 : f32
    %39 = vector.broadcast %cst_19 : f32 to vector<1x128xf32>
    %40 = arith.mulf %35, %39 : vector<1x128xf32>
    %cst_20 = arith.constant 1.250000e-01 : f32
    %41 = vector.broadcast %cst_20 : f32 to vector<1x128xf32>
    %42 = arith.mulf %38, %41 : vector<1x128xf32>
    %43 = arith.mulf %40, %40 : vector<1x128xf32>
    %44 = arith.subf %42, %43 : vector<1x128xf32>
    %cst_21 = arith.constant 0.000000e+00 : f32
    %45 = vector.broadcast %cst_21 : f32 to vector<1x128xf32>
    %46 = arith.maximumf %44, %45 : vector<1x128xf32>
    %cst_22 = arith.constant 9.99999974E-6 : f32
    %47 = vector.broadcast %cst_22 : f32 to vector<1x128xf32>
    %48 = arith.addf %46, %47 : vector<1x128xf32>
    %49 = math.rsqrt %48 : vector<1x128xf32>
    %50 = arith.mulf %6, %49 : vector<1x128xf32>
    %51 = arith.mulf %40, %50 : vector<1x128xf32>
    %52 = arith.subf %7, %51 : vector<1x128xf32>
    %53 = vector.broadcast %50 : vector<1x128xf32> to vector<8x128xf32>
    %54 = arith.mulf %33, %53 : vector<8x128xf32>
    %55 = vector.broadcast %52 : vector<1x128xf32> to vector<8x128xf32>
    %56 = arith.addf %54, %55 : vector<8x128xf32>
    %cst_23 = arith.constant dense<0.000000e+00> : vector<8x128xf32>
    %57 = tpu.matmul %56, %3, %cst_23 {dimension_numbers = #tpu.dot_dimension_numbers<[1], [0], [0], [1], [0, 0, 1, 1], [], []>} : vector<8x128xf32>, vector<128x128xf32>, vector<8x128xf32> -> vector<8x128xf32>
    %58 = vector.broadcast %8 : vector<1x128xf32> to vector<8x128xf32>
    %59 = arith.addf %57, %58 : vector<8x128xf32>
    %c0_24 = arith.constant 0 : index
    %c0_25 = arith.constant 0 : index
    %60 = vector.load %arg2[%c0_24, %c0_25] : memref<8x128xf32, #tpu.memory_space<vmem>>, vector<8x128xf32>
    tpu.vector_store %arg2[%c0_24, %c0_25], %59 {strides = array<i32>} : memref<8x128xf32, #tpu.memory_space<vmem>>, vector<8x128xf32>,
    return
  }
}

</mosaic_0001>

<llo_original>
// kernel: neural_network_layer_cup.1
$region0: #{neural_network_layer_cup.1}
  #allocation0 [shape = 'u32[]', space=smem, size = 0x4, offset = 0x4, fixed_abs, tag = 'smem constant byte address 0x4 - core index']
  #allocation1 [shape = 'u32[144,128]{1,0:T(1,128)}', space=vmem, size = 0x12000, scoped, tag = 'internal scratch']
  %s0 = inlined_call_operand.hbm [shape: f32[8,10], index: 0, kind: input, shape index: {}]
  %s1 = inlined_call_operand.hbm [shape: f32[280,128], index: 1, kind: input, shape index: {}]
  %s2 = inlined_call_operand.vmem [shape: f32[8,128], index: 2, kind: output, shape index: {}]
  %s3 = sld [smem:[#allocation0]]
  $region26: #{neural_network_layer_cup.1} parent=0
    _
  %s5 = ssub.s32 1, %s3
  %s6 = scalar_select 0, %s5, %s3
  $region1: #{neural_network_layer_cup.1} parent=0
    #allocation2 [shape = 'u8[4096]{0}', space=vmem, size = 0x1000, scoped, tag = 'input window, operand 0, single buffered']
    #allocation3 [shape = 's32[1]{0}', space=sflag, size = 0x4, scoped, tag = 'scoped memory for neural_network_layer_cup.1']
    #allocation4 [shape = 'u8[143360]{0}', space=vmem, size = 0x23000, scoped, tag = 'input window, operand 1, single buffered']
    #allocation5 [shape = 's32[1]{0}', space=sflag, size = 0x4, scoped, tag = 'scoped memory for neural_network_layer_cup.1']
    %7 = vsyncpa [#allocation3], 0
    %8 = vsyncpa [#allocation5], 0
    // Predicated region
    $region2: #{neural_network_layer_cup.1} parent=1 // pred_check
      _
    $region3: #{neural_network_layer_cup.1} parent=1 // pred_check_branch
      %10 = sbr.rel (0) target = $region5
    $region4: #{neural_network_layer_cup.1} parent=1 // pred_region
      %s12 = ssub.s32 128, 128
      %13 = vsyncadd [#allocation3], %s12
      %s15 = sshll.u32 [#allocation2], 4
      %s16 = int_to_ptr.vmem [resolvable:$true] %s15
      %18 = dma.hbm_to_vmem [thread:$0]  %s0, 128, %s16, [#allocation3]
    $region5: #{neural_network_layer_cup.1} parent=1 // pred_fallthru
      _
    // Predicated region
    $region6: #{neural_network_layer_cup.1} parent=1 // pred_check
      _
    $region7: #{neural_network_layer_cup.1} parent=1 // pred_check_branch
      %20 = sbr.rel (0) target = $region9
    $region8: #{neural_network_layer_cup.1} parent=1 // pred_region
      %s22 = ssub.s32 4480, 4480
      %23 = vsyncadd [#allocation5], %s22
      %s24 = sshll.u32 [#allocation4], 4
      %s25 = int_to_ptr.vmem [resolvable:$true] %s24
      %30 = dma.hbm_to_vmem [thread:$0]  %s1, 4480, %s25, [#allocation5], 128, 128, 8
    $region9: #{neural_network_layer_cup.1} parent=1 // pred_fallthru
      _
    // Predicated region
    $region10: #{neural_network_layer_cup.1} parent=1 // pred_check
      _
    $region11: #{neural_network_layer_cup.1} parent=1 // pred_check_branch
      %32 = sbr.rel (0) target = $region13
    $region12: #{neural_network_layer_cup.1} parent=1 // pred_region
      %33 = dma.done [#allocation3], 128
    $region13: #{neural_network_layer_cup.1} parent=1 // pred_fallthru
      _
    // Predicated region
    $region14: #{neural_network_layer_cup.1} parent=1 // pred_check
      _
    $region15: #{neural_network_layer_cup.1} parent=1 // pred_check_branch
      %35 = sbr.rel (0) target = $region17
    $region16: #{neural_network_layer_cup.1} parent=1 // pred_region
      %36 = dma.done [#allocation5], 4480
    $region17: #{neural_network_layer_cup.1} parent=1 // pred_fallthru
      _
    %v37 = vld [vmem:[#allocation2] sm:$0xff]
    %v38 = vld [vmem:[#allocation4] sm:$0xff]
    %v39 = vld [vmem:[#allocation4 + $0x8] sm:$0x3]
    %v40 = vld [vmem:[#allocation4 + $0x10] sm:$0xff]
    %v41 = vld [vmem:[#allocation4 + $0x18] sm:$0xff]
    %v42 = vld [vmem:[#allocation4 + $0x20] sm:$0xff]
    %v43 = vld [vmem:[#allocation4 + $0x28] sm:$0xff]
    %v44 = vld [vmem:[#allocation4 + $0x30] sm:$0xff]
    %v45 = vld [vmem:[#allocation4 + $0x38] sm:$0xff]
    %v46 = vld [vmem:[#allocation4 + $0x40] sm:$0xff]
    %v47 = vld [vmem:[#allocation4 + $0x48] sm:$0xff]
    %v48 = vld [vmem:[#allocation4 + $0x50] sm:$0xff]
    %v49 = vld [vmem:[#allocation4 + $0x58] sm:$0xff]
    %v50 = vld [vmem:[#allocation4 + $0x60] sm:$0xff]
    %v51 = vld [vmem:[#allocation4 + $0x68] sm:$0xff]
    %v52 = vld [vmem:[#allocation4 + $0x70] sm:$0xff]
    %v53 = vld [vmem:[#allocation4 + $0x78] sm:$0xff]
    %v54 = vld [vmem:[#allocation4 + $0x80] sm:$0xff]
    %v55 = vld [vmem:[#allocation4 + $0x88] sm:$0xff]
    %v56 = vld [vmem:[#allocation4 + $0x90] sm:$0xff]
    %v57 = vld [vmem:[#allocation4 + $0x98] sm:$0xff]
    %v58 = vld [vmem:[#allocation4 + $0xa0] sm:$0xff]
    %v59 = vld [vmem:[#allocation4 + $0xa8] sm:$0xff]
    %v60 = vld [vmem:[#allocation4 + $0xb0] sm:$0xff]
    %v61 = vld [vmem:[#allocation4 + $0xb8] sm:$0xff]
    %v62 = vld [vmem:[#allocation4 + $0xc0] sm:$0xff]
    %v63 = vld [vmem:[#allocation4 + $0xc8] sm:$0xff]
    %v64 = vld [vmem:[#allocation4 + $0xd0] sm:$0xff]
    %v65 = vld [vmem:[#allocation4 + $0xd8] sm:$0xff]
    %v66 = vld [vmem:[#allocation4 + $0xe0] sm:$0xff]
    %v67 = vld [vmem:[#allocation4 + $0xe8] sm:$0xff]
    %v68 = vld [vmem:[#allocation4 + $0xf0] sm:$0xff]
    %v69 = vld [vmem:[#allocation4 + $0xf8] sm:$0xff]
    %v70 = vld [vmem:[#allocation4 + $0x100] sm:$0xff]
    %v71 = vld [vmem:[#allocation4 + $0x108] sm:$0xff]
    %v72 = vld [vmem:[#allocation4 + $0x110] sm:$0x1]
    %v73 = vld [vmem:[#allocation4 + $0x111] sm:$0x1]
    %v74 = vld [vmem:[#allocation4 + $0x112] sm:$0x1]
    %v75 = vld [vmem:[#allocation4 + $0x113] sm:$0x1]
    %v76 = vld [vmem:[#allocation4 + $0x114] sm:$0x1]
    %vm77 = vcmask 80896
    %v79 = vsel %vm77, %v37, 0
    %vm81 = vcmask 1041408
    %v83 = vsel %vm81, %v39, 0
    %85 = vmatprep.subr.mxu0 0.0
    %86 = vmatpush1.msra.mxu0 %v38
    %87 = vmatprep.subr.mxu0 0.0
    %88 = vmatpush1.msra.mxu0 %v83
    %89 = vmatprep.subr.mxu0 0.0
    %90 = vmatpush1.msra.mxu0 0.0
    %91 = vmatprep.subr.mxu0 0.0
    %92 = vmatpush1.msra.mxu0 0.0
    %93 = vmatprep.subr.mxu0 0.0
    %94 = vmatpush1.msra.mxu0 0.0
    %95 = vmatprep.subr.mxu0 0.0
    %96 = vmatpush1.msra.mxu0 0.0
    %97 = vmatprep.subr.mxu0 0.0
    %98 = vmatpush1.msra.mxu0 0.0
    %99 = vmatprep.subr.mxu0 0.0
    %100 = vmatpush1.msra.mxu0 0.0
    %101 = vmatprep.subr.mxu0 0.0
    %102 = vmatpush1.msra.mxu0 0.0
    %103 = vmatprep.subr.mxu0 0.0
    %104 = vmatpush1.msra.mxu0 0.0
    %105 = vmatprep.subr.mxu0 0.0
    %106 = vmatpush1.msra.mxu0 0.0
    %107 = vmatprep.subr.mxu0 0.0
    %108 = vmatpush1.msra.mxu0 0.0
    %109 = vmatprep.subr.mxu0 0.0
    %110 = vmatpush1.msra.mxu0 0.0
    %111 = vmatprep.subr.mxu0 0.0
    %112 = vmatpush1.msra.mxu0 0.0
    %113 = vmatprep.subr.mxu0 0.0
    %114 = vmatpush1.msra.mxu0 0.0
    %115 = vmatprep.subr.mxu0 0.0
    %116 = vmatpush1.msra.mxu0 0.0
    %117 = vmatprep.subr.mxu0 0.0
    %118 = vmatpush1.msra.mxu0 0.0
    %119 = vmatprep.subr.mxu0 0.0
    %120 = vmatpush1.msra.mxu0 0.0
    %121 = vmatprep.subr.mxu0 0.0
    %122 = vmatpush1.msra.mxu0 0.0
    %123 = vmatprep.subr.mxu0 0.0
    %124 = vmatpush1.msra.mxu0 0.0
    %125 = vmatprep.subr.mxu0 0.0
    %126 = vmatpush1.msra.mxu0 0.0
    %127 = vmatprep.subr.mxu0 0.0
    %128 = vmatpush1.msra.mxu0 0.0
    %129 = vmatprep.subr.mxu0 0.0
    %130 = vmatpush1.msra.mxu0 0.0
    %131 = vmatprep.subr.mxu0 0.0
    %132 = vmatpush1.msra.mxu0 0.0
    %133 = vmatprep.subr.mxu0 0.0
    %134 = vmatpush1.msra.mxu0 0.0
    %135 = vmatprep.subr.mxu0 0.0
    %136 = vmatpush1.msra.mxu0 0.0
    %137 = vmatprep.subr.mxu0 0.0
    %138 = vmatpush1.msra.mxu0 0.0
    %139 = vmatprep.subr.mxu0 0.0
    %140 = vmatpush1.msra.mxu0 0.0
    %141 = vmatprep.subr.mxu0 0.0
    %142 = vmatpush1.msra.mxu0 0.0
    %143 = vmatprep.subr.mxu0 0.0
    %144 = vmatpush1.msra.mxu0 0.0
    %145 = vmatprep.subr.mxu0 0.0
    %146 = vmatpush1.msra.mxu0 0.0
    %147 = vmatprep.subr.mxu0 0.0
    %148 = vmatpush1.msra.mxu0 0.0
    %149 = vmatprep.mubr.f32.mxu0 0.0
    %150 = vmatmul.mubr.f32.gmra.mrb[0].mxu0 %v79
    %v151 = vpop.f32.mrb[0].mxu0
    %v152 = vadd.f32 0.0, %v151
    %v153 = vpop.f32.mrb[0].mxu0
    %154 = vdwg.mxu0
    %v155 = vrot.slane %v152, 4
    %v156 = vadd.f32 %v152, %v155
    %v157 = vrot.slane %v156, 2
    %v158 = vadd.f32 %v156, %v157
    %v159 = vrot.slane %v158, 1
    %v160 = vadd.f32 %v158, %v159
    %v161 = vmul.f32 %v152, %v152
    %v162 = vrot.slane %v161, 4
    %v163 = vadd.f32 %v161, %v162
    %v164 = vrot.slane %v163, 2
    %v165 = vadd.f32 %v163, %v164
    %v166 = vrot.slane %v165, 1
    %v167 = vadd.f32 %v165, %v166
    %v168 = vmul.f32 %v160, 0.125
    %v169 = vmul.f32 %v167, 0.125
    %v170 = vmul.f32 %v168, %v168
    %v171 = vsub.f32 %v169, %v170
    %v172 = vmax.f32 %v171, 0.0
    %v173 = vadd.f32 %v172, 1e-05
    %v174 = vrsqrt.pop %v173
    %v175 = vmul.f32 %v72, %v174
    %v176 = vmul.f32 %v168, %v175
    %v177 = vsub.f32 %v73, %v176
    %v178 = vlaneseq
    %v179 = vshrl.u32 %v178, 7
    %v180 = vsub.s32 0, %v179
    %v181 = vrot.slane %v175, %v180
    %v182 = vmul.f32 %v152, %v181
    %v183 = vlaneseq
    %v184 = vshrl.u32 %v183, 7
    %v185 = vsub.s32 0, %v184
    %v186 = vrot.slane %v177, %v185
    %v187 = vadd.f32 %v182, %v186
    %188 = vmatprep.subr.mxu0 0.0
    %189 = vmatpush1.msra.mxu0 %v40
    %190 = vmatprep.subr.mxu0 0.0
    %191 = vmatpush1.msra.mxu0 %v41
    %192 = vmatprep.subr.mxu0 0.0
    %193 = vmatpush1.msra.mxu0 %v42
    %194 = vmatprep.subr.mxu0 0.0
    %195 = vmatpush1.msra.mxu0 %v43
    %196 = vmatprep.subr.mxu0 0.0
    %197 = vmatpush1.msra.mxu0 %v44
    %198 = vmatprep.subr.mxu0 0.0
    %199 = vmatpush1.msra.mxu0 %v45
    %200 = vmatprep.subr.mxu0 0.0
    %201 = vmatpush1.msra.mxu0 %v46
    %202 = vmatprep.subr.mxu0 0.0
    %203 = vmatpush1.msra.mxu0 %v47
    %204 = vmatprep.subr.mxu0 0.0
    %205 = vmatpush1.msra.mxu0 %v48
    %206 = vmatprep.subr.mxu0 0.0
    %207 = vmatpush1.msra.mxu0 %v49
    %208 = vmatprep.subr.mxu0 0.0
    %209 = vmatpush1.msra.mxu0 %v50
    %210 = vmatprep.subr.mxu0 0.0
    %211 = vmatpush1.msra.mxu0 %v51
    %212 = vmatprep.subr.mxu0 0.0
    %213 = vmatpush1.msra.mxu0 %v52
    %214 = vmatprep.subr.mxu0 0.0
    %215 = vmatpush1.msra.mxu0 %v53
    %216 = vmatprep.subr.mxu0 0.0
    %217 = vmatpush1.msra.mxu0 %v54
    %218 = vmatprep.subr.mxu0 0.0
    %219 = vmatpush1.msra.mxu0 %v55
    %220 = vmatprep.subr.mxu0 0.0
    %221 = vmatpush1.msra.mxu0 0.0
    %222 = vmatprep.subr.mxu0 0.0
    %223 = vmatpush1.msra.mxu0 0.0
    %224 = vmatprep.subr.mxu0 0.0
    %225 = vmatpush1.msra.mxu0 0.0
    %226 = vmatprep.subr.mxu0 0.0
    %227 = vmatpush1.msra.mxu0 0.0
    %228 = vmatprep.subr.mxu0 0.0
    %229 = vmatpush1.msra.mxu0 0.0
    %230 = vmatprep.subr.mxu0 0.0
    %231 = vmatpush1.msra.mxu0 0.0
    %232 = vmatprep.subr.mxu0 0.0
    %233 = vmatpush1.msra.mxu0 0.0
    %234 = vmatprep.subr.mxu0 0.0
    %235 = vmatpush1.msra.mxu0 0.0
    %236 = vmatprep.subr.mxu0 0.0
    %237 = vmatpush1.msra.mxu0 0.0
    %238 = vmatprep.subr.mxu0 0.0
    %239 = vmatpush1.msra.mxu0 0.0
    %240 = vmatprep.subr.mxu0 0.0
    %241 = vmatpush1.msra.mxu0 0.0
    %242 = vmatprep.subr.mxu0 0.0
    %243 = vmatpush1.msra.mxu0 0.0
    %244 = vmatprep.subr.mxu0 0.0
    %245 = vmatpush1.msra.mxu0 0.0
    %246 = vmatprep.subr.mxu0 0.0
    %247 = vmatpush1.msra.mxu0 0.0
    %248 = vmatprep.subr.mxu0 0.0
    %249 = vmatpush1.msra.mxu0 0.0
    %250 = vmatprep.subr.mxu0 0.0
    %251 = vmatpush1.msra.mxu0 0.0
    %252 = vmatprep.mubr.f32.mxu0 0.0
    %253 = vmatmul.mubr.f32.gmra.mrb[0].mxu0 %v187
    %v254 = vpop.f32.mrb[0].mxu0
    %v255 = vadd.f32 0.0, %v254
    %v256 = vpop.f32.mrb[0].mxu0
    %257 = vdwg.mxu0
    %v258 = vrot.slane %v255, 4
    %v259 = vadd.f32 %v255, %v258
    %v260 = vrot.slane %v259, 2
    %v261 = vadd.f32 %v259, %v260
    %v262 = vrot.slane %v261, 1
    %v263 = vadd.f32 %v261, %v262
    %v264 = vmul.f32 %v255, %v255
    %v265 = vrot.slane %v264, 4
    %v266 = vadd.f32 %v264, %v265
    %v267 = vrot.slane %v266, 2
    %v268 = vadd.f32 %v266, %v267
    %v269 = vrot.slane %v268, 1
    %v270 = vadd.f32 %v268, %v269
    %v271 = vmul.f32 %v263, 0.125
    %v272 = vmul.f32 %v270, 0.125
    %v273 = vmul.f32 %v271, %v271
    %v274 = vsub.f32 %v272, %v273
    %v275 = vmax.f32 %v274, 0.0
    %v276 = vadd.f32 %v275, 1e-05
    %v277 = vrsqrt.pop %v276
    %v278 = vmul.f32 %v74, %v277
    %v279 = vmul.f32 %v271, %v278
    %v280 = vsub.f32 %v75, %v279
    %v281 = vlaneseq
    %v282 = vshrl.u32 %v281, 7
    %v283 = vsub.s32 0, %v282
    %v284 = vrot.slane %v278, %v283
    %v285 = vmul.f32 %v255, %v284
    %v286 = vlaneseq
    %v287 = vshrl.u32 %v286, 7
    %v288 = vsub.s32 0, %v287
    %v289 = vrot.slane %v280, %v288
    %v290 = vadd.f32 %v285, %v289
    %v291 = vlaneseq
    %v292 = vshrl.u32 %v291, 7
    %v293 = vsub.s32 0, %v292
    %v294 = vrot.slane %v76, %v293
    %295 = vmatprep.subr.mxu0 0.0
    %296 = vmatpush1.msra.mxu0 %v56
    %297 = vmatprep.subr.mxu0 0.0
    %298 = vmatpush1.msra.mxu0 %v57
    %299 = vmatprep.subr.mxu0 0.0
    %300 = vmatpush1.msra.mxu0 %v58
    %301 = vmatprep.subr.mxu0 0.0
    %302 = vmatpush1.msra.mxu0 %v59
    %303 = vmatprep.subr.mxu0 0.0
    %304 = vmatpush1.msra.mxu0 %v60
    %305 = vmatprep.subr.mxu0 0.0
    %306 = vmatpush1.msra.mxu0 %v61
    %307 = vmatprep.subr.mxu0 0.0
    %308 = vmatpush1.msra.mxu0 %v62
    %309 = vmatprep.subr.mxu0 0.0
    %310 = vmatpush1.msra.mxu0 %v63
    %311 = vmatprep.subr.mxu0 0.0
    %312 = vmatpush1.msra.mxu0 %v64
    %313 = vmatprep.subr.mxu0 0.0
    %314 = vmatpush1.msra.mxu0 %v65
    %315 = vmatprep.subr.mxu0 0.0
    %316 = vmatpush1.msra.mxu0 %v66
    %317 = vmatprep.subr.mxu0 0.0
    %318 = vmatpush1.msra.mxu0 %v67
    %319 = vmatprep.subr.mxu0 0.0
    %320 = vmatpush1.msra.mxu0 %v68
    %321 = vmatprep.subr.mxu0 0.0
    %322 = vmatpush1.msra.mxu0 %v69
    %323 = vmatprep.subr.mxu0 0.0
    %324 = vmatpush1.msra.mxu0 %v70
    %325 = vmatprep.subr.mxu0 0.0
    %326 = vmatpush1.msra.mxu0 %v71
    %327 = vmatprep.subr.mxu0 0.0
    %328 = vmatpush1.msra.mxu0 0.0
    %329 = vmatprep.subr.mxu0 0.0
    %330 = vmatpush1.msra.mxu0 0.0
    %331 = vmatprep.subr.mxu0 0.0
    %332 = vmatpush1.msra.mxu0 0.0
    %333 = vmatprep.subr.mxu0 0.0
    %334 = vmatpush1.msra.mxu0 0.0
    %335 = vmatprep.subr.mxu0 0.0
    %336 = vmatpush1.msra.mxu0 0.0
    %337 = vmatprep.subr.mxu0 0.0
    %338 = vmatpush1.msra.mxu0 0.0
    %339 = vmatprep.subr.mxu0 0.0
    %340 = vmatpush1.msra.mxu0 0.0
    %341 = vmatprep.subr.mxu0 0.0
    %342 = vmatpush1.msra.mxu0 0.0
    %343 = vmatprep.subr.mxu0 0.0
    %344 = vmatpush1.msra.mxu0 0.0
    %345 = vmatprep.subr.mxu0 0.0
    %346 = vmatpush1.msra.mxu0 0.0
    %347 = vmatprep.subr.mxu0 0.0
    %348 = vmatpush1.msra.mxu0 0.0
    %349 = vmatprep.subr.mxu0 0.0
    %350 = vmatpush1.msra.mxu0 0.0
    %351 = vmatprep.subr.mxu0 0.0
    %352 = vmatpush1.msra.mxu0 0.0
    %353 = vmatprep.subr.mxu0 0.0
    %354 = vmatpush1.msra.mxu0 0.0
    %355 = vmatprep.subr.mxu0 0.0
    %356 = vmatpush1.msra.mxu0 0.0
    %357 = vmatprep.subr.mxu0 0.0
    %358 = vmatpush1.msra.mxu0 0.0
    %359 = vmatprep.mubr.f32.mxu0 0.0
    %360 = vmatmul.mubr.f32.gmra.mrb[0].mxu0 %v290
    %v361 = vpop.f32.mrb[0].mxu0
    %v362 = vadd.f32 %v294, %v361
    %v363 = vpop.f32.mrb[0].mxu0
    %364 = vdwg.mxu0
    %365 = vst [vmem:[%s2] sm:$0xff] %v362
    // Predicated region
    $region18: #{neural_network_layer_cup.1} parent=1 // pred_check
      _
    $region19: #{neural_network_layer_cup.1} parent=1 // pred_check_branch
      %367 = sbr.rel (0) target = $region21
    $region20: #{neural_network_layer_cup.1} parent=1 // pred_region
      _
    $region21: #{neural_network_layer_cup.1} parent=1 // pred_fallthru
      _
    // Predicated region
    $region22: #{neural_network_layer_cup.1} parent=1 // pred_check
      _
    $region23: #{neural_network_layer_cup.1} parent=1 // pred_check_branch
      %369 = sbr.rel (0) target = $region25
    $region24: #{neural_network_layer_cup.1} parent=1 // pred_region
      _
    $region25: #{neural_network_layer_cup.1} parent=1 // pred_fallthru
      _
    %370 = vsyncpa [#allocation3], 1
    %371 = vsyncpa [#allocation5], 1

</llo_original>
